<compile_context>
chip_gen: v7x
topology: tpu7x:2x2x1
jax: 0.10.0
libtpu: 0.0.40
codegen_flags: <defaults>
</compile_context>

<pallas_src>
import functools

import jax
import jax.numpy as jnp
import numpy as np
from jax.experimental import pallas as pl
from jax.experimental.pallas import tpu as pltpu

_EPS = 1e-12


def _log_loss_kernel(x_ref, out_ref, *, eps, inv_count):
    n = pl.program_id(0)
    h = pl.program_id(1)

    @pl.when(jnp.logical_and(n == 0, h == 0))
    def _init():
        out_ref[...] = jnp.zeros_like(out_ref)

    x = x_ref[0]                                   # (C, tile) f32, lane-dense
    m = jnp.max(x, axis=0, keepdims=True)          # channel max (sublane reduce)
    e = jnp.exp(x - m)
    s = jnp.sum(e, axis=0, keepdims=True)
    nll = -jnp.log(e / s + eps)                    # -log(softmax(x, dim=1) + eps)
    out_ref[...] = out_ref[...] + jnp.sum(nll)     # accumulate scalar partial

    @pl.when(jnp.logical_and(n == pl.num_programs(0) - 1,
                             h == pl.num_programs(1) - 1))
    def _finalize():
        out_ref[...] = out_ref[...] * inv_count    # turn the sum into the mean


def _pick_spatial_tile(hw):
    """Largest multiple-of-128 divisor of hw (<= 2048), else the full extent."""
    if hw % 128 != 0:
        return hw
    start = min(hw, 2048)
    start -= start % 128
    for cand in range(start, 127, -128):
        if hw % cand == 0:
            return cand
    return 128


def log_loss(x, eps=_EPS):
    """Pallas TPU implementation of LogLoss.forward: -mean(log(softmax(x,1)+eps))."""
    x = x.astype(jnp.float32)
    N, C = int(x.shape[0]), int(x.shape[1])
    hw = 1
    for d in x.shape[2:]:
        hw *= int(d)
    xr = x.reshape(N, C, hw)                       # lane-dense: spatial on lanes

    tile = _pick_spatial_tile(hw)
    nb = hw // tile
    inv_count = 1.0 / float(N * C * hw)

    kernel = functools.partial(_log_loss_kernel, eps=eps, inv_count=inv_count)

    out = pl.pallas_call(
        kernel,
        out_shape=jax.ShapeDtypeStruct((1, 1), jnp.float32),
        grid_spec=pltpu.PrefetchScalarGridSpec(
            num_scalar_prefetch=0,
            grid=(N, nb),
            in_specs=[pl.BlockSpec((1, C, tile), lambda n, h: (n, 0, h))],
            out_specs=pl.BlockSpec((1, 1), lambda n, h: (0, 0)),
        ),
        compiler_params=pltpu.CompilerParams(
            dimension_semantics=("arbitrary", "arbitrary")),
    )(xr)
    return out[0, 0]


def log_loss_ref(x, eps=_EPS):
    """Pure-JAX reference matching the PyTorch forward."""
    d = jax.nn.softmax(x.astype(jnp.float32), axis=1) + eps
    return -jnp.mean(jnp.log(d))


if __name__ == "__main__":
    key = jax.random.PRNGKey(0)
    N, C, H, W = 2, 4, 16, 16
    x = jax.random.normal(key, (N, C, H, W), jnp.float32)

    out = jax.block_until_ready(log_loss(x))
    ref = jax.block_until_ready(log_loss_ref(x))
    assert np.allclose(np.asarray(out), np.asarray(ref), rtol=1e-4, atol=1e-5), (out, ref)
    print("KERNEL_OK")
</pallas_src>

<mosaic_0001>
module attributes {stable_mosaic.version = 11 : i64} {
  func.func @_log_loss_kernel(%arg0: i32, %arg1: i32, %arg2: memref<1x4x256xf32, #tpu.memory_space<vmem>>, %arg3: memref<1x1xf32, #tpu.memory_space<vmem>>) attributes {dimension_semantics = [#tpu.dimension_semantics<arbitrary>, #tpu.dimension_semantics<arbitrary>], iteration_bounds = array<i64: 2, 1>, scalar_prefetch = 0 : i64, scratch_operands = 0 : i64, tpu.core_type = #tpu.core_type<tc>, window_params = [{transform_indices = @transform_0, window_bounds = array<i64: 1, 4, 256>}, {pipeline_mode = #tpu.pipeline_mode<synchronous>, transform_indices = @transform_1, window_bounds = array<i64: 1, 1>}]} {
    %c0_i32 = arith.constant 0 : i32
    %0 = arith.cmpi eq, %arg0, %c0_i32 : i32
    %c0_i32_0 = arith.constant 0 : i32
    %1 = arith.cmpi eq, %arg1, %c0_i32_0 : i32
    %2 = arith.andi %0, %1 : i1
    %3 = arith.extui %2 : i1 to i32
    %c0_i32_1 = arith.constant 0 : i32
    %4 = arith.cmpi ne, %3, %c0_i32_1 : i32
    scf.if %4 {
      %cst_14 = arith.constant 0.000000e+00 : f32
      %34 = vector.broadcast %cst_14 : f32 to vector<1x1xf32>
      %c0_15 = arith.constant 0 : index
      %c0_16 = arith.constant 0 : index
      %35 = vector.load %arg3[%c0_15, %c0_16] : memref<1x1xf32, #tpu.memory_space<vmem>>, vector<1x1xf32>
      tpu.vector_store %arg3[%c0_15, %c0_16], %34 {strides = array<i32>} : memref<1x1xf32, #tpu.memory_space<vmem>>, vector<1x1xf32>,
    } else {
    }
    %c0 = arith.constant 0 : index
    %c0_2 = arith.constant 0 : index
    %c0_3 = arith.constant 0 : index
    %5 = vector.load %arg2[%c0, %c0_2, %c0_3] : memref<1x4x256xf32, #tpu.memory_space<vmem>>, vector<1x4x256xf32>
    %6 = vector.shape_cast %5 : vector<1x4x256xf32> to vector<4x256xf32>
    %cst = arith.constant dense<0xFF800000> : vector<256xf32>
    %7 = vector.multi_reduction <maximumf>, %6, %cst [0] : vector<4x256xf32> to vector<256xf32>
    %8 = vector.shape_cast %7 : vector<256xf32> to vector<1x256xf32>
    %9 = vector.broadcast %8 : vector<1x256xf32> to vector<4x256xf32>
    %10 = arith.subf %6, %9 : vector<4x256xf32>
    %11 = math.exp %10 : vector<4x256xf32>
    %cst_4 = arith.constant dense<0.000000e+00> : vector<256xf32>
    %12 = vector.multi_reduction <add>, %11, %cst_4 [0] : vector<4x256xf32> to vector<256xf32>
    %13 = vector.shape_cast %12 : vector<256xf32> to vector<1x256xf32>
    %14 = vector.broadcast %13 : vector<1x256xf32> to vector<4x256xf32>
    %15 = arith.divf %11, %14 : vector<4x256xf32>
    %cst_5 = arith.constant 9.99999996E-13 : f32
    %16 = vector.broadcast %cst_5 : f32 to vector<4x256xf32>
    %17 = arith.addf %15, %16 : vector<4x256xf32>
    %18 = math.log %17 : vector<4x256xf32>
    %cst_6 = arith.constant 0.000000e+00 : f32
    %19 = vector.broadcast %cst_6 : f32 to vector<4x256xf32>
    %20 = arith.subf %19, %18 : vector<4x256xf32>
    %c0_7 = arith.constant 0 : index
    %c0_8 = arith.constant 0 : index
    %21 = vector.load %arg3[%c0_7, %c0_8] : memref<1x1xf32, #tpu.memory_space<vmem>>, vector<1x1xf32>
    %22 = vector.shape_cast %20 : vector<4x256xf32> to vector<1x4x256xf32>
    %cst_9 = arith.constant dense<0.000000e+00> : vector<1xf32>
    %23 = vector.multi_reduction <add>, %22, %cst_9 [1, 2] : vector<1x4x256xf32> to vector<1xf32>
    %24 = vector.shape_cast %23 : vector<1xf32> to vector<1x1x1xf32>
    %25 = vector.extract %24[0, 0, 0] : f32 from vector<1x1x1xf32>
    %26 = vector.broadcast %25 : f32 to vector<1x1xf32>
    %27 = arith.addf %21, %26 : vector<1x1xf32>
    %c0_10 = arith.constant 0 : index
    %c0_11 = arith.constant 0 : index
    %28 = vector.load %arg3[%c0_10, %c0_11] : memref<1x1xf32, #tpu.memory_space<vmem>>, vector<1x1xf32>
    tpu.vector_store %arg3[%c0_10, %c0_11], %27 {strides = array<i32>} : memref<1x1xf32, #tpu.memory_space<vmem>>, vector<1x1xf32>,
    %c1_i32 = arith.constant 1 : i32
    %29 = arith.cmpi eq, %arg0, %c1_i32 : i32
    %c0_i32_12 = arith.constant 0 : i32
    %30 = arith.cmpi eq, %arg1, %c0_i32_12 : i32
    %31 = arith.andi %29, %30 : i1
    %32 = arith.extui %31 : i1 to i32
    %c0_i32_13 = arith.constant 0 : i32
    %33 = arith.cmpi ne, %32, %c0_i32_13 : i32
    scf.if %33 {
      %c0_14 = arith.constant 0 : index
      %c0_15 = arith.constant 0 : index
      %34 = vector.load %arg3[%c0_14, %c0_15] : memref<1x1xf32, #tpu.memory_space<vmem>>, vector<1x1xf32>
      %cst_16 = arith.constant 4.8828125E-4 : f32
      %35 = vector.broadcast %cst_16 : f32 to vector<1x1xf32>
      %36 = arith.mulf %34, %35 : vector<1x1xf32>
      %c0_17 = arith.constant 0 : index
      %c0_18 = arith.constant 0 : index
      %37 = vector.load %arg3[%c0_17, %c0_18] : memref<1x1xf32, #tpu.memory_space<vmem>>, vector<1x1xf32>
      tpu.vector_store %arg3[%c0_17, %c0_18], %36 {strides = array<i32>} : memref<1x1xf32, #tpu.memory_space<vmem>>, vector<1x1xf32>,
    } else {
    }
    return
  }
  func.func @transform_0(%arg0: i32, %arg1: i32) -> (i32, i32, i32) {
    %c0_i32 = arith.constant 0 : i32
    %c0_i32_0 = arith.constant 0 : i32
    return %arg0, %c0_i32, %arg1 : i32, i32, i32
  }
  func.func @transform_1(%arg0: i32, %arg1: i32) -> (i32, i32) {
    %c0_i32 = arith.constant 0 : i32
    %c0_i32_0 = arith.constant 0 : i32
    %c0_i32_1 = arith.constant 0 : i32
    return %c0_i32, %c0_i32_0 : i32, i32
  }
}

</mosaic_0001>

<llo_original>
// kernel: tpu_custom_call.1
$region0: #{tpu_custom_call.1}
  #allocation0 [shape = 'u32[]', space=smem, size = 0x4, offset = 0x4, fixed_abs, tag = 'smem constant byte address 0x4 - core index']
  #allocation1 [shape = 'u32[144,128]{1,0:T(1,128)}', space=vmem, size = 0x12000, scoped, tag = 'internal scratch']
  %s0 = inlined_call_operand.hbm [shape: f32[2,4,256], index: 0, kind: input, shape index: {}]
  %s1 = inlined_call_operand.hbm [shape: f32[1,1], index: 1, kind: output, shape index: {}]
  %s2 = sld [smem:[#allocation0]]
  $region49: #{tpu_custom_call.1} parent=0
    _
  %s4 = ssub.s32 1, %s2
  %s5 = scalar_select 0, %s4, %s2
  $region1: #{tpu_custom_call.1} parent=0
    #allocation2 [shape = 'u8[8192]{0}', space=vmem, size = 0x2000, scoped, tag = 'input window, operand 0']
    #allocation3 [shape = 's32[2]{0}', space=sflag, size = 0x8, scoped, tag = 'scoped memory for tpu_custom_call.1']
    #allocation4 [shape = 's32[2]{0}', space=sflag, size = 0x8, scoped, tag = 'scoped memory for tpu_custom_call.1']
    #allocation5 [shape = 'u8[512]{0}', space=vmem, size = 0x400, scoped, tag = 'output window, operand 0, single buffered']
    %6 = vsyncpa [#allocation3], 0
    %s7 = scalar_lea.sflag [#allocation3], 1
    %8 = vsyncpa %s7, 0
    %9 = vsyncpa [#allocation4], 0
    loop: start=0, step=1, limit=4
    $region2: #{tpu_custom_call.1} parent=1 // loop_pre_header
      _
    $region3: #{tpu_custom_call.1} parent=1 // loop_header
      %s11 = sphi 0, %s15
      %p12 = scmp.ge.s32.totalorder %s11, 4
      %s18 = sphi 0, %s30
      %s19 = sphi 0, %s26
      %s20 = sphi 0, %s18
      %s21 = sphi 0, %s19
      %s22 = sphi 0, %s20
      %s23 = sphi 0, %s21
      %s35 = sphi 0, %s37
      %s38 = sphi 0, %s35
      %s39 = sphi 0, %s38
      %s55 = sphi 0, %s39
      %s59 = sphi 0, %s59
      %s61 = sphi 0, %s59
      %s62 = sphi 0, %s61
      %s76 = sphi 0, %s62
    $region4: #{tpu_custom_call.1} parent=1 // loop_header_branch
      %14 = sbr.rel (%p12) target = $region8
    $region5: #{tpu_custom_call.1} parent=1 // loop_body
      %s16 = ssub.s32 %s11, 1
      %s17 = ssub.s32 %s11, 2
      %s24 = sadd.s32 1, %s19
      %p25 = scmp.ge.s32.totalorder %s24, 1
      %s26 = scalar_select %p25, 0, %s24
      %s27 = sadd.s32 1, %s18
      %s28 = scalar_select %p25, %s27, %s18
      %p29 = scmp.ge.s32.totalorder %s28, 2
      %s30 = scalar_select %p29, 0, %s28
      %s31 = ssub.s32 %s18, %s30
      %s32 = ssub.s32 %s19, %s26
      %s33 = sor.u32 %s31, %s32
      %p34 = scmp.eq.s32.totalorder %s33, 0
      %s36 = sadd.s32 %s35, 1
      %s37 = scalar_select %p34, %s35, %s36
      %p40 = pneg %p34
      %p41 = scmp.eq.s32.totalorder %s11, 1
      %p42 = por %p40, %p41
      %p43 = scmp.ne.s32.totalorder %s35, %s38
      %p44 = scmp.eq.s32.totalorder %s11, 0
      %p45 = por %p43, %p44
      %p46 = scmp.ne.s32.totalorder %s35, %s38
      %p47 = scmp.eq.s32.totalorder %s16, 1
      %p48 = por %p46, %p47
      %p49 = scmp.ne.s32.totalorder %s38, %s39
      %p50 = scmp.eq.s32.totalorder %s16, 0
      %p51 = por %p49, %p50
      %p52 = scmp.ne.s32.totalorder %s38, %s39
      %p53 = scmp.eq.s32.totalorder %s17, 1
      %p54 = por %p52, %p53
      %p56 = scmp.ne.s32.totalorder %s39, %s55
      %p57 = scmp.eq.s32.totalorder %s17, 0
      %p58 = por %p56, %p57
      %s60 = sadd.s32 %s59, 1
      %p63 = scmp.eq.s32.totalorder %s11, 1
      %p64 = scmp.ne.s32.totalorder %s59, %s61
      %p65 = scmp.eq.s32.totalorder %s11, 0
      %p66 = por %p64, %p65
      %p67 = scmp.ne.s32.totalorder %s59, %s61
      %p68 = scmp.eq.s32.totalorder %s16, 1
      %p69 = por %p67, %p68
      %p70 = scmp.ne.s32.totalorder %s61, %s62
      %p71 = scmp.eq.s32.totalorder %s16, 0
      %p72 = por %p70, %p71
      %p73 = scmp.ne.s32.totalorder %s61, %s62
      %p74 = scmp.eq.s32.totalorder %s17, 1
      %p75 = por %p73, %p74
      %p77 = scmp.ne.s32.totalorder %s62, %s76
      %p78 = scmp.eq.s32.totalorder %s17, 0
      %p79 = por %p77, %p78
      %p80 = scmp.le.s32.totalorder 1, %s11
      %p81 = scmp.lt.s32.totalorder %s11, 3
      %p82 = pnand %p80, %p81
      %p83 = pneg %p82
      // Predicated region
      $region9: #{tpu_custom_call.1} parent=5 // pred_check
        _
      $region10: #{tpu_custom_call.1} parent=5 // pred_check_branch
        %85 = sbr.rel (%p82) target = $region12
      $region11: #{tpu_custom_call.1} parent=5 // pred_region
        %s86 = ssub.s32 %s11, 1
      $region12: #{tpu_custom_call.1} parent=5 // pred_fallthru
        _
      %p87 = scmp.lt.s32.totalorder %s11, 2
      // Predicated region
      $region13: #{tpu_custom_call.1} parent=5 // pred_check
        %p88 = pneg %p87
      $region14: #{tpu_custom_call.1} parent=5 // pred_check_branch
        %90 = sbr.rel (%p88) target = $region16
      $region15: #{tpu_custom_call.1} parent=5 // pred_region
        // Predicated region
        $region17: #{tpu_custom_call.1} parent=15 // pred_check
          %p91 = pneg %p45
        $region18: #{tpu_custom_call.1} parent=15 // pred_check_branch
          %93 = sbr.rel (%p91) target = $region20
        $region19: #{tpu_custom_call.1} parent=15 // pred_region
          %s94 = sand.u32 %s35, 1
          %s95 = scalar_lea.sflag [#allocation3], %s94
          %s96 = sand.u32 %s35, 1
          %s97 = smul.addr %s96, 8
          %s98 = scalar_lea.vmem [#allocation2], %s97
          %s99 = smul.u32 2, %s19
          %s101 = ssub.s32 128, 128
          %102 = vsyncadd %s95, %s101
          %s103 = smul.addr %s18, 2
          %s104 = sadd.s32 %s99, %s103
          %s105 = smul.addr %s104, 64
          %s106 = scalar_lea.hbm %s0, %s105
          %s108 = sshll.u32 %s98, 4
          %s109 = int_to_ptr.vmem [resolvable:$true] %s108
          %111 = dma.hbm_to_vmem [thread:$0]  %s106, 128, %s109, %s95
        $region20: #{tpu_custom_call.1} parent=15 // pred_fallthru
          _
      $region16: #{tpu_custom_call.1} parent=5 // pred_fallthru
        _
      %p112 = scmp.le.s32.totalorder 1, %s11
      %p113 = scmp.lt.s32.totalorder %s11, 3
      %p114 = pnand %p112, %p113
      %p115 = pneg %p114
      // Predicated region
      $region21: #{tpu_custom_call.1} parent=5 // pred_check
        _
      $region22: #{tpu_custom_call.1} parent=5 // pred_check_branch
        %117 = sbr.rel (%p114) target = $region24
      $region23: #{tpu_custom_call.1} parent=5 // pred_region
        %s118 = ssub.s32 %s11, 1
        %s119 = sand.u32 %s38, 1
        %s120 = scalar_lea.sflag [#allocation3], %s119
        %s121 = sand.u32 %s38, 1
        %s122 = smul.addr %s121, 8
        %s123 = scalar_lea.vmem [#allocation2], %s122
        // Predicated region
        $region25: #{tpu_custom_call.1} parent=23 // pred_check
          %p124 = pneg %p51
        $region26: #{tpu_custom_call.1} parent=23 // pred_check_branch
          %126 = sbr.rel (%p124) target = $region28
        $region27: #{tpu_custom_call.1} parent=23 // pred_region
          %127 = dma.done %s120, 128
        $region28: #{tpu_custom_call.1} parent=23 // pred_fallthru
          _
        %s128 = sand.u32 %s38, 1
        %s129 = scalar_lea.sflag [#allocation3], %s128
        %s130 = sand.u32 %s38, 1
        %s131 = smul.addr %s130, 8
        %s132 = scalar_lea.vmem [#allocation2], %s131
        %p133 = pneg %p51
        %p134 = pneg %p48
        %p135 = pneg %p72
        %p136 = pneg %p69
        %s137 = smul.u32 2, %s21
        %p138 = scmp.eq.s32.totalorder %s20, 0
        %p139 = scmp.eq.s32.totalorder %s21, 0
        %p140 = pnand %p138, %p139
        %p141 = pneg %p140
        // Predicated region
        $region29: #{tpu_custom_call.1} parent=23 // pred_check
          _
        $region30: #{tpu_custom_call.1} parent=23 // pred_check_branch
          %143 = sbr.rel (%p140) target = $region32
        $region31: #{tpu_custom_call.1} parent=23 // pred_region
          %vm144 = vcmask 0
          %145 = vst.msk [vmem:[#allocation5] sm:$0x1] %vm144, 0.0
        $region32: #{tpu_custom_call.1} parent=23 // pred_fallthru
          _
        %v146 = vld [vmem:[%s123] sm:$0xff]
        %v148 = vcombine.high %v146, %v146
        %vm150 = vcmask 1043456
        %v151 = vsel %vm150, %v146, -inf
        %v152 = vrot.slane %v151, 4
        %v153 = vmax.f32 %v151, %v152
        %v154 = vrot.slane %v153, 2
        %v155 = vmax.f32 %v153, %v154
        %v156 = vrot.slane %v155, 1
        %v157 = vmax.f32 %v155, %v156
        %v158 = vsel %vm150, %v148, -inf
        %v159 = vrot.slane %v158, 4
        %v160 = vmax.f32 %v158, %v159
        %v161 = vrot.slane %v160, 2
        %v162 = vmax.f32 %v160, %v161
        %v163 = vrot.slane %v162, 1
        %v164 = vmax.f32 %v162, %v163
        %v167 = vcombine.low %v157, %v164
        %v169 = vsub.f32 %v146, %v167
        %v170 = vmul.f32 %v169, 1.442695
        %v171 = vpow.pop %v170
        %v173 = vcombine.high %v171, %v171
        %v175 = vsel %vm150, %v171, 0.0
        %v176 = vrot.slane %v175, 4
        %v177 = vadd.f32 %v175, %v176
        %v178 = vrot.slane %v177, 2
        %v179 = vadd.f32 %v177, %v178
        %v180 = vrot.slane %v179, 1
        %v181 = vadd.f32 %v179, %v180
        %v182 = vsel %vm150, %v173, 0.0
        %v183 = vrot.slane %v182, 4
        %v184 = vadd.f32 %v182, %v183
        %v185 = vrot.slane %v184, 2
        %v186 = vadd.f32 %v184, %v185
        %v187 = vrot.slane %v186, 1
        %v188 = vadd.f32 %v186, %v187
        %v191 = vcombine.low %v181, %v188
        %v193 = vrcp.pop %v191
        %v194 = vmul.f32 %v171, %v193
        %v195 = vadd.f32 %v194, 1e-12
        %v196 = vlog2.pop %v195
        %v197 = vmul.f32 %v196, 0.6931472
        %v198 = vsub.f32 0.0, %v197
        %v199 = vld [vmem:[#allocation5] sm:$0x1]
        %v201 = vcombine.high %v198, %v198
        %v203 = vsel %vm150, %v198, 0.0
        %v204 = vsel %vm150, %v201, 0.0
        %v205 = vadd.f32 %v203, %v204
        %206 = vadd.xlane.f32.xlu0 %v205
        %v207 = vpop.xlane.xlu0 %206
        %v208 = vrot.slane %v207, 4
        %v209 = vadd.f32 %v207, %v208
        %v210 = vrot.slane %v209, 2
        %v211 = vadd.f32 %v209, %v210
        %v212 = vrot.slane %v211, 1
        %v213 = vadd.f32 %v211, %v212
        %s214 = vtos %v213
        %v215 = vstv %s214
        %v216 = vadd.f32 %v199, %v215
        %vm217 = vcmask 0
        %218 = vst.msk [vmem:[#allocation5] sm:$0x1] %vm217, %v216
        %p219 = scmp.eq.s32.totalorder %s20, 1
        %p220 = pnand %p219, %p139
        %p221 = pneg %p220
        // Predicated region
        $region33: #{tpu_custom_call.1} parent=23 // pred_check
          _
        $region34: #{tpu_custom_call.1} parent=23 // pred_check_branch
          %223 = sbr.rel (%p220) target = $region36
        $region35: #{tpu_custom_call.1} parent=23 // pred_region
          %v224 = vld [vmem:[#allocation5] sm:$0x1]
          %v225 = vmul.f32 %v224, 0.00048828125
          %226 = vst.msk [vmem:[#allocation5] sm:$0x1] %vm217, %v225
        $region36: #{tpu_custom_call.1} parent=23 // pred_fallthru
          _
        // Predicated region
        $region37: #{tpu_custom_call.1} parent=23 // pred_check
          %p227 = pneg %p69
        $region38: #{tpu_custom_call.1} parent=23 // pred_check_branch
          %229 = sbr.rel (%p227) target = $region40
        $region39: #{tpu_custom_call.1} parent=23 // pred_region
          %s231 = ssub.s32 16, 16
          %232 = vsyncadd [#allocation4], %s231
          %s234 = sshll.u32 [#allocation5], 4
          %s235 = int_to_ptr.vmem [resolvable:$true] %s234
          %237 = dma.vmem_to_hbm [thread:$0]  %s235, 16, %s1, [#allocation4]
        $region40: #{tpu_custom_call.1} parent=23 // pred_fallthru
          _
        // Predicated region
        $region41: #{tpu_custom_call.1} parent=23 // pred_check
          %p238 = pneg %p69
        $region42: #{tpu_custom_call.1} parent=23 // pred_check_branch
          %240 = sbr.rel (%p238) target = $region44
        $region43: #{tpu_custom_call.1} parent=23 // pred_region
          %241 = dma.done [#allocation4], 16
        $region44: #{tpu_custom_call.1} parent=23 // pred_fallthru
          _
      $region24: #{tpu_custom_call.1} parent=5 // pred_fallthru
        _
      %p242 = scmp.le.s32.totalorder 2, %s11
      // Predicated region
      $region45: #{tpu_custom_call.1} parent=5 // pred_check
        %p243 = pneg %p242
      $region46: #{tpu_custom_call.1} parent=5 // pred_check_branch
        %245 = sbr.rel (%p243) target = $region48
      $region47: #{tpu_custom_call.1} parent=5 // pred_region
        %s246 = ssub.s32 %s11, 2
      $region48: #{tpu_custom_call.1} parent=5 // pred_fallthru
        _
    $region6: #{tpu_custom_call.1} parent=1 // loop_footer
      %s15 = sadd.s32 1, %s11
    $region7: #{tpu_custom_call.1} parent=1 // loop_footer_branch
      %10 = sbr.rel target = $region3
    $region8: #{tpu_custom_call.1} parent=1 // loop_exit
      _
    %247 = vsyncpa [#allocation3], 1
    %s248 = scalar_lea.sflag [#allocation3], 1
    %249 = vsyncpa %s248, 1
    %250 = vsyncpa [#allocation4], 1
    %s251 = scalar_lea.sflag [#allocation4], 1
    %252 = vsyncpa %s251, 1

</llo_original>
